<compile_context>
chip_gen: v6e
topology: v6e:2x2x1
jax: 0.10.0
libtpu: 0.0.40
codegen_flags: <defaults>
</compile_context>

<pallas_src>
import functools

import jax
import jax.numpy as jnp
from jax.experimental import pallas as pl
from jax.experimental.pallas import tpu as pltpu

EPS = 1e-6


def _round_up(x, m):
    return ((x + m - 1) // m) * m


def _hist_kernel(x_ref, out_ref, acc_ref, *, h, nt, true_n, n_pad, sigma,
                 method, eps_thr, intensity_scale):
    """Accumulates the three (h, h) channel histograms of one image.

    Grid: (L, n_pad // nt).  Axis 0 = image ("parallel"),
    axis 1 = pixel-tile reduction ("arbitrary", accumulated in acc_ref).

    x_ref:   (1, 3, nt)   clipped RGB pixels of the current tile
    out_ref: (1, 3, h, h) written only at the last reduction step
    acc_ref: (3, h, h)    f32 VMEM accumulator
    """
    k = pl.program_id(1)

    @pl.when(k == 0)
    def _init():
        acc_ref[...] = jnp.zeros_like(acc_ref)

    x = x_ref[0]                                    # (3, nt), already in [0, 1]
    lx = jnp.log(x + EPS)                           # single log over the tile
    lr = lx[0:1, :]
    lg = lx[1:2, :]
    lb = lx[2:3, :]
    d_rg = lr - lg                                  # (1, nt)
    d_rb = lr - lb
    d_gb = lg - lb

    # Intensity scale I_y and padded-lane mask (mask folded into I_y).
    if intensity_scale:
        sq = x * x
        iy = jnp.sqrt(sq[0:1, :] + sq[1:2, :] + sq[2:3, :] + EPS)   # (1, nt)
    else:
        iy = None
    if true_n != n_pad:            # static check: only emit mask when padding
        idx = jax.lax.broadcasted_iota(jnp.int32, (1, nt), 1) + k * nt
        valid = (idx < true_n).astype(jnp.float32)
        iy = valid if iy is None else iy * valid

    # Bin centers linspace(-3, 3, h) as a column vector, generated in-kernel.
    bins = (jax.lax.broadcasted_iota(jnp.int32, (h, 1), 0).astype(jnp.float32)
            * (6.0 / (h - 1)) - 3.0)                # (h, 1)

    inv_sigma2 = 1.0 / (sigma * sigma)              # hoisted Python constant

    def kmat(d):                                    # (h, nt) kernel matrix K(d)
        diff = bins - d
        if method == 'thresholding':
            return (jnp.abs(diff) <= (eps_thr * 0.5)).astype(jnp.float32)
        dd = (diff * diff) * inv_sigma2             # no abs needed (squared)
        if method == 'RBF':
            return jnp.exp(-dd)
        # 'inverse-quadratic': approx reciprocal runs on the EUP slot.
        return pl.reciprocal(1.0 + dd, approx=True)

    k_rg = kmat(d_rg)
    k_rb = kmat(d_rb)
    k_gb = kmat(d_gb)

    a_rg = k_rg if iy is None else k_rg * iy
    a_rb = k_rb if iy is None else k_rb * iy

    dn = (((1,), (1,)), ((), ()))                   # contract over pixels
    # Raw (un-flipped) histograms; channel 1/2 flips are undone in the wrapper:
    #   hist0 = (iy*K_rg) @ K_rb^T
    #   hist1 = flip_u  ((iy*K_rg) @ K_gb^T)
    #   hist2 = flip_uv ((iy*K_rb) @ K_gb^T)
    acc_ref[0, :, :] += jax.lax.dot_general(
        a_rg, k_rb, dn, preferred_element_type=jnp.float32)
    acc_ref[1, :, :] += jax.lax.dot_general(
        a_rg, k_gb, dn, preferred_element_type=jnp.float32)
    acc_ref[2, :, :] += jax.lax.dot_general(
        a_rb, k_gb, dn, preferred_element_type=jnp.float32)

    @pl.when(k == pl.num_programs(1) - 1)
    def _finalize():
        out_ref[0, :, :, :] = acc_ref[...]


def rgb_uv_hist_block(x, *, h=64, insz=150, resizing='interpolation',
                      method='inverse-quadratic', sigma=0.02,
                      intensity_scale=True, block_n=2048):
    """JAX/Pallas equivalent of RGBuvHistBlock.forward. x: (L, C, H, W) float32."""
    if method not in ('thresholding', 'RBF', 'inverse-quadratic'):
        raise ValueError(f'Wrong kernel method: {method}')

    x = jnp.clip(x.astype(jnp.float32), 0.0, 1.0)
    L, C, H, W = x.shape

    if H > insz or W > insz:
        if resizing == 'interpolation':
            # TODO(synk): jax.image.resize antialiases on downscale, unlike
            # F.interpolate(mode='bilinear', align_corners=False).
            x = jax.image.resize(x, (L, C, insz, insz), method='bilinear')
        elif resizing == 'sampling':
            inds_1 = jnp.floor(jnp.linspace(0, H, h, endpoint=False)).astype(jnp.int32)
            inds_2 = jnp.floor(jnp.linspace(0, W, h, endpoint=False)).astype(jnp.int32)
            x = x[:, :, inds_1, :][:, :, :, inds_2]
        else:
            raise ValueError(f'Wrong resizing method: {resizing}')

    if x.shape[1] > 3:
        x = x[:, :3, :, :]

    n = x.shape[2] * x.shape[3]
    x_flat = x.reshape(L, 3, n)

    # Lane-aligned, tile-divisible pixel count (padded lanes masked in-kernel).
    nt = min(block_n, _round_up(n, 128))
    n_pad = _round_up(n, nt)
    if n_pad != n:
        x_flat = jnp.pad(x_flat, ((0, 0), (0, 0), (0, n_pad - n)))
    num_k = n_pad // nt

    kernel = functools.partial(
        _hist_kernel, h=h, nt=nt, true_n=n, n_pad=n_pad, sigma=sigma,
        method=method, eps_thr=6.0 / h, intensity_scale=intensity_scale)

    hists_raw = pl.pallas_call(
        kernel,
        out_shape=jax.ShapeDtypeStruct((L, 3, h, h), jnp.float32),
        grid_spec=pltpu.PrefetchScalarGridSpec(
            num_scalar_prefetch=0,
            grid=(L, num_k),
            in_specs=[pl.BlockSpec((1, 3, nt), lambda l, k: (l, 0, k))],
            out_specs=pl.BlockSpec((1, 3, h, h), lambda l, k: (l, 0, 0, 0)),
            scratch_shapes=[pltpu.VMEM((3, h, h), jnp.float32)],
        ),
        compiler_params=pltpu.CompilerParams(
            dimension_semantics=("parallel", "arbitrary")),
    )(x_flat)

    # Undo the bin-symmetry trick: channel 1 is flipped along the u-bin axis,
    # channel 2 along both u and v (tiny (h, h) flips, done wrapper-side).
    hists = jnp.stack(
        [hists_raw[:, 0],
         jnp.flip(hists_raw[:, 1], axis=-2),
         jnp.flip(hists_raw[:, 2], axis=(-2, -1))], axis=1)

    norm = hists.sum(axis=(1, 2, 3), keepdims=True) + EPS
    return hists / norm


def _reference_jax(x, *, h=64, sigma=0.02, intensity_scale=True):
    """Pure-JAX reference (inverse-quadratic path) for correctness checking."""
    x = jnp.clip(x, 0.0, 1.0)[:, :3]
    L = x.shape[0]
    N = x.shape[2] * x.shape[3]
    bins = jnp.linspace(-3.0, 3.0, h, dtype=jnp.float32)
    hists = []
    for l in range(L):
        I = x[l].reshape(3, N).T                       # (N, 3)
        II = I * I
        Iy = jnp.sqrt(II[:, 0] + II[:, 1] + II[:, 2] + EPS)[:, None] \
            if intensity_scale else 1.0
        per_channel = []
        chan_pairs = [(0, 1, 2), (1, 0, 2), (2, 0, 1)]
        for (a_, b_, c_) in chan_pairs:
            Iu = (jnp.log(I[:, a_] + EPS) - jnp.log(I[:, b_] + EPS))[:, None]
            Iv = (jnp.log(I[:, a_] + EPS) - jnp.log(I[:, c_] + EPS))[:, None]
            du = jnp.abs(Iu - bins[None, :])
            dv = jnp.abs(Iv - bins[None, :])
            ku = 1.0 / (1.0 + (du * du) / (sigma * sigma))
            kv = 1.0 / (1.0 + (dv * dv) / (sigma * sigma))
            per_channel.append((Iy * ku).T @ kv)
        hists.append(jnp.stack(per_channel, axis=0))
    hists = jnp.stack(hists, axis=0)
    norm = hists.sum(axis=(1, 2, 3), keepdims=True) + EPS
    return hists / norm


if __name__ == "__main__":
    key = jax.random.PRNGKey(0)
    k1, k2 = jax.random.split(key)

    # Check 1: batch=2, channels=4 (>3 exercises the channel crop), 16x16.
    x = jax.random.uniform(k1, (2, 4, 16, 16), dtype=jnp.float32)
    out = rgb_uv_hist_block(x, h=64, insz=150, method='inverse-quadratic',
                            sigma=0.02, intensity_scale=True)
    out = jax.block_until_ready(out)
    ref = _reference_jax(x, h=64, sigma=0.02, intensity_scale=True)
    assert out.shape == (2, 3, 64, 64)
    # approx EUP reciprocal introduces sub-percent relative error vs exact f32.
    assert jnp.allclose(out, ref, rtol=1e-2, atol=1e-6), "mismatch (small case)"

    # Check 2: exercise the pixel-tiling reduction + padded-lane masking
    # (24*24 = 576 pixels, block_n=256 -> 3 reduction steps, 192 padded lanes).
    x2 = jax.random.uniform(k2, (2, 3, 24, 24), dtype=jnp.float32)
    out2 = jax.block_until_ready(rgb_uv_hist_block(x2, h=64, block_n=256))
    ref2 = _reference_jax(x2, h=64, sigma=0.02, intensity_scale=True)
    assert jnp.allclose(out2, ref2, rtol=1e-2, atol=1e-6), "mismatch (tiled case)"

    print("KERNEL_OK")
</pallas_src>

<mosaic_0001>
module attributes {stable_mosaic.version = 11 : i64} {
  func.func @_hist_kernel(%arg0: i32, %arg1: i32, %arg2: memref<1x3x256xf32, #tpu.memory_space<vmem>>, %arg3: memref<1x3x64x64xf32, #tpu.memory_space<vmem>>, %arg4: memref<3x64x64xf32, #tpu.memory_space<vmem>>) attributes {dimension_semantics = [#tpu.dimension_semantics<parallel>, #tpu.dimension_semantics<arbitrary>], iteration_bounds = array<i64: 2, 1>, scalar_prefetch = 0 : i64, scratch_operands = 1 : i64, tpu.core_type = #tpu.core_type<tc>, window_params = [{transform_indices = @transform_0, window_bounds = array<i64: 1, 3, 256>}, {transform_indices = @transform_1, window_bounds = array<i64: 1, 3, 64, 64>}]} {
    %c0_i32 = arith.constant 0 : i32
    %0 = arith.cmpi eq, %arg1, %c0_i32 : i32
    %1 = arith.extui %0 : i1 to i32
    %c0_i32_0 = arith.constant 0 : i32
    %2 = arith.cmpi ne, %1, %c0_i32_0 : i32
    scf.if %2 {
      %cst_33 = arith.constant 0.000000e+00 : f32
      %84 = vector.broadcast %cst_33 : f32 to vector<3x64x64xf32>
      %c0_34 = arith.constant 0 : index
      %c0_35 = arith.constant 0 : index
      %c0_36 = arith.constant 0 : index
      %85 = vector.load %arg4[%c0_34, %c0_35, %c0_36] : memref<3x64x64xf32, #tpu.memory_space<vmem>>, vector<3x64x64xf32>
      tpu.vector_store %arg4[%c0_34, %c0_35, %c0_36], %84 {strides = array<i32>} : memref<3x64x64xf32, #tpu.memory_space<vmem>>, vector<3x64x64xf32>,
    } else {
    }
    %c0 = arith.constant 0 : index
    %c0_1 = arith.constant 0 : index
    %c0_2 = arith.constant 0 : index
    %3 = vector.load %arg2[%c0, %c0_1, %c0_2] : memref<1x3x256xf32, #tpu.memory_space<vmem>>, vector<1x3x256xf32>
    %4 = vector.shape_cast %3 : vector<1x3x256xf32> to vector<3x256xf32>
    %cst = arith.constant 9.99999997E-7 : f32
    %5 = vector.broadcast %cst : f32 to vector<3x256xf32>
    %6 = arith.addf %4, %5 : vector<3x256xf32>
    %7 = math.log %6 : vector<3x256xf32>
    %8 = vector.extract_strided_slice %7 {offsets = [0, 0], sizes = [1, 256], strides = [1, 1]} : vector<3x256xf32> to vector<1x256xf32>
    %9 = vector.extract_strided_slice %7 {offsets = [1, 0], sizes = [1, 256], strides = [1, 1]} : vector<3x256xf32> to vector<1x256xf32>
    %10 = vector.extract_strided_slice %7 {offsets = [2, 0], sizes = [1, 256], strides = [1, 1]} : vector<3x256xf32> to vector<1x256xf32>
    %11 = arith.subf %8, %9 : vector<1x256xf32>
    %12 = arith.subf %8, %10 : vector<1x256xf32>
    %13 = arith.subf %9, %10 : vector<1x256xf32>
    %14 = arith.mulf %4, %4 : vector<3x256xf32>
    %15 = vector.extract_strided_slice %14 {offsets = [0, 0], sizes = [1, 256], strides = [1, 1]} : vector<3x256xf32> to vector<1x256xf32>
    %16 = vector.extract_strided_slice %14 {offsets = [1, 0], sizes = [1, 256], strides = [1, 1]} : vector<3x256xf32> to vector<1x256xf32>
    %17 = arith.addf %15, %16 : vector<1x256xf32>
    %18 = vector.extract_strided_slice %14 {offsets = [2, 0], sizes = [1, 256], strides = [1, 1]} : vector<3x256xf32> to vector<1x256xf32>
    %19 = arith.addf %17, %18 : vector<1x256xf32>
    %cst_3 = arith.constant 9.99999997E-7 : f32
    %20 = vector.broadcast %cst_3 : f32 to vector<1x256xf32>
    %21 = arith.addf %19, %20 : vector<1x256xf32>
    %22 = math.sqrt %21 : vector<1x256xf32>
    %23 = tpu.iota {dimensions = array<i32: 0>} : vector<64x1xi32>
    %24 = arith.sitofp %23 : vector<64x1xi32> to vector<64x1xf32>
    %cst_4 = arith.constant 0.095238097 : f32
    %25 = vector.broadcast %cst_4 : f32 to vector<64x1xf32>
    %26 = arith.mulf %24, %25 : vector<64x1xf32>
    %cst_5 = arith.constant 3.000000e+00 : f32
    %27 = vector.broadcast %cst_5 : f32 to vector<64x1xf32>
    %28 = arith.subf %26, %27 : vector<64x1xf32>
    %29 = vector.broadcast %28 : vector<64x1xf32> to vector<64x256xf32>
    %30 = vector.broadcast %11 : vector<1x256xf32> to vector<64x256xf32>
    %31 = arith.subf %29, %30 : vector<64x256xf32>
    %32 = arith.mulf %31, %31 : vector<64x256xf32>
    %cst_6 = arith.constant 2.500000e+03 : f32
    %33 = vector.broadcast %cst_6 : f32 to vector<64x256xf32>
    %34 = arith.mulf %32, %33 : vector<64x256xf32>
    %cst_7 = arith.constant 1.000000e+00 : f32
    %35 = vector.broadcast %cst_7 : f32 to vector<64x256xf32>
    %36 = arith.addf %35, %34 : vector<64x256xf32>
    %37 = tpu.reciprocal %36 {approx = true} : vector<64x256xf32> -> vector<64x256xf32>
    %38 = vector.broadcast %28 : vector<64x1xf32> to vector<64x256xf32>
    %39 = vector.broadcast %12 : vector<1x256xf32> to vector<64x256xf32>
    %40 = arith.subf %38, %39 : vector<64x256xf32>
    %41 = arith.mulf %40, %40 : vector<64x256xf32>
    %cst_8 = arith.constant 2.500000e+03 : f32
    %42 = vector.broadcast %cst_8 : f32 to vector<64x256xf32>
    %43 = arith.mulf %41, %42 : vector<64x256xf32>
    %cst_9 = arith.constant 1.000000e+00 : f32
    %44 = vector.broadcast %cst_9 : f32 to vector<64x256xf32>
    %45 = arith.addf %44, %43 : vector<64x256xf32>
    %46 = tpu.reciprocal %45 {approx = true} : vector<64x256xf32> -> vector<64x256xf32>
    %47 = vector.broadcast %28 : vector<64x1xf32> to vector<64x256xf32>
    %48 = vector.broadcast %13 : vector<1x256xf32> to vector<64x256xf32>
    %49 = arith.subf %47, %48 : vector<64x256xf32>
    %50 = arith.mulf %49, %49 : vector<64x256xf32>
    %cst_10 = arith.constant 2.500000e+03 : f32
    %51 = vector.broadcast %cst_10 : f32 to vector<64x256xf32>
    %52 = arith.mulf %50, %51 : vector<64x256xf32>
    %cst_11 = arith.constant 1.000000e+00 : f32
    %53 = vector.broadcast %cst_11 : f32 to vector<64x256xf32>
    %54 = arith.addf %53, %52 : vector<64x256xf32>
    %55 = tpu.reciprocal %54 {approx = true} : vector<64x256xf32> -> vector<64x256xf32>
    %56 = vector.broadcast %22 : vector<1x256xf32> to vector<64x256xf32>
    %57 = arith.mulf %37, %56 : vector<64x256xf32>
    %58 = vector.broadcast %22 : vector<1x256xf32> to vector<64x256xf32>
    %59 = arith.mulf %46, %58 : vector<64x256xf32>
    %c0_12 = arith.constant 0 : index
    %c0_13 = arith.constant 0 : index
    %c0_14 = arith.constant 0 : index
    %60 = vector.load %arg4[%c0_12, %c0_13, %c0_14] : memref<3x64x64xf32, #tpu.memory_space<vmem>>, vector<1x64x64xf32>
    %61 = vector.shape_cast %60 : vector<1x64x64xf32> to vector<64x64xf32>
    %cst_15 = arith.constant dense<0.000000e+00> : vector<64x64xf32>
    %62 = tpu.matmul %57, %46, %cst_15 {dimension_numbers = #tpu.dot_dimension_numbers<[1], [1], [0], [0], [0, 0, 1, 0], [], []>} : vector<64x256xf32>, vector<64x256xf32>, vector<64x64xf32> -> vector<64x64xf32>
    %63 = arith.addf %61, %62 : vector<64x64xf32>
    %c0_16 = arith.constant 0 : index
    %c0_17 = arith.constant 0 : index
    %c0_18 = arith.constant 0 : index
    %64 = vector.load %arg4[%c0_16, %c0_17, %c0_18] : memref<3x64x64xf32, #tpu.memory_space<vmem>>, vector<1x64x64xf32>
    %65 = vector.shape_cast %64 : vector<1x64x64xf32> to vector<64x64xf32>
    %66 = vector.shape_cast %63 : vector<64x64xf32> to vector<1x64x64xf32>
    tpu.vector_store %arg4[%c0_16, %c0_17, %c0_18], %66 {strides = array<i32>} : memref<3x64x64xf32, #tpu.memory_space<vmem>>, vector<1x64x64xf32>,
    %c1 = arith.constant 1 : index
    %c0_19 = arith.constant 0 : index
    %c0_20 = arith.constant 0 : index
    %67 = vector.load %arg4[%c1, %c0_19, %c0_20] : memref<3x64x64xf32, #tpu.memory_space<vmem>>, vector<1x64x64xf32>
    %68 = vector.shape_cast %67 : vector<1x64x64xf32> to vector<64x64xf32>
    %cst_21 = arith.constant dense<0.000000e+00> : vector<64x64xf32>
    %69 = tpu.matmul %57, %55, %cst_21 {dimension_numbers = #tpu.dot_dimension_numbers<[1], [1], [0], [0], [0, 0, 1, 0], [], []>} : vector<64x256xf32>, vector<64x256xf32>, vector<64x64xf32> -> vector<64x64xf32>
    %70 = arith.addf %68, %69 : vector<64x64xf32>
    %c1_22 = arith.constant 1 : index
    %c0_23 = arith.constant 0 : index
    %c0_24 = arith.constant 0 : index
    %71 = vector.load %arg4[%c1_22, %c0_23, %c0_24] : memref<3x64x64xf32, #tpu.memory_space<vmem>>, vector<1x64x64xf32>
    %72 = vector.shape_cast %71 : vector<1x64x64xf32> to vector<64x64xf32>
    %73 = vector.shape_cast %70 : vector<64x64xf32> to vector<1x64x64xf32>
    tpu.vector_store %arg4[%c1_22, %c0_23, %c0_24], %73 {strides = array<i32>} : memref<3x64x64xf32, #tpu.memory_space<vmem>>, vector<1x64x64xf32>,
    %c2 = arith.constant 2 : index
    %c0_25 = arith.constant 0 : index
    %c0_26 = arith.constant 0 : index
    %74 = vector.load %arg4[%c2, %c0_25, %c0_26] : memref<3x64x64xf32, #tpu.memory_space<vmem>>, vector<1x64x64xf32>
    %75 = vector.shape_cast %74 : vector<1x64x64xf32> to vector<64x64xf32>
    %cst_27 = arith.constant dense<0.000000e+00> : vector<64x64xf32>
    %76 = tpu.matmul %59, %55, %cst_27 {dimension_numbers = #tpu.dot_dimension_numbers<[1], [1], [0], [0], [0, 0, 1, 0], [], []>} : vector<64x256xf32>, vector<64x256xf32>, vector<64x64xf32> -> vector<64x64xf32>
    %77 = arith.addf %75, %76 : vector<64x64xf32>
    %c2_28 = arith.constant 2 : index
    %c0_29 = arith.constant 0 : index
    %c0_30 = arith.constant 0 : index
    %78 = vector.load %arg4[%c2_28, %c0_29, %c0_30] : memref<3x64x64xf32, #tpu.memory_space<vmem>>, vector<1x64x64xf32>
    %79 = vector.shape_cast %78 : vector<1x64x64xf32> to vector<64x64xf32>
    %80 = vector.shape_cast %77 : vector<64x64xf32> to vector<1x64x64xf32>
    tpu.vector_store %arg4[%c2_28, %c0_29, %c0_30], %80 {strides = array<i32>} : memref<3x64x64xf32, #tpu.memory_space<vmem>>, vector<1x64x64xf32>,
    %c0_i32_31 = arith.constant 0 : i32
    %81 = arith.cmpi eq, %arg1, %c0_i32_31 : i32
    %82 = arith.extui %81 : i1 to i32
    %c0_i32_32 = arith.constant 0 : i32
    %83 = arith.cmpi ne, %82, %c0_i32_32 : i32
    scf.if %83 {
      %c0_33 = arith.constant 0 : index
      %c0_34 = arith.constant 0 : index
      %c0_35 = arith.constant 0 : index
      %84 = vector.load %arg4[%c0_33, %c0_34, %c0_35] : memref<3x64x64xf32, #tpu.memory_space<vmem>>, vector<3x64x64xf32>
      %c0_36 = arith.constant 0 : index
      %c0_37 = arith.constant 0 : index
      %c0_38 = arith.constant 0 : index
      %c0_39 = arith.constant 0 : index
      %85 = vector.load %arg3[%c0_36, %c0_37, %c0_38, %c0_39] : memref<1x3x64x64xf32, #tpu.memory_space<vmem>>, vector<1x3x64x64xf32>
      %86 = vector.shape_cast %85 : vector<1x3x64x64xf32> to vector<3x64x64xf32>
      %87 = vector.shape_cast %84 : vector<3x64x64xf32> to vector<1x3x64x64xf32>
      tpu.vector_store %arg3[%c0_36, %c0_37, %c0_38, %c0_39], %87 {strides = array<i32>} : memref<1x3x64x64xf32, #tpu.memory_space<vmem>>, vector<1x3x64x64xf32>,
    } else {
    }
    return
  }
  func.func @transform_0(%arg0: i32, %arg1: i32) -> (i32, i32, i32) {
    %c0_i32 = arith.constant 0 : i32
    %c0_i32_0 = arith.constant 0 : i32
    return %arg0, %c0_i32, %arg1 : i32, i32, i32
  }
  func.func @transform_1(%arg0: i32, %arg1: i32) -> (i32, i32, i32, i32) {
    %c0_i32 = arith.constant 0 : i32
    %c0_i32_0 = arith.constant 0 : i32
    %c0_i32_1 = arith.constant 0 : i32
    %c0_i32_2 = arith.constant 0 : i32
    return %arg0, %c0_i32, %c0_i32_0, %c0_i32_1 : i32, i32, i32, i32
  }
}

</mosaic_0001>

<llo_original>
// kernel: tpu_custom_call.1
$region0: #{tpu_custom_call.1}
  #allocation0 [shape = 'u32[]', space=smem, size = 0x4, offset = 0x4, fixed_abs, tag = 'smem constant byte address 0x4 - core index']
  #allocation1 [shape = 'u32[144,128]{1,0:T(1,128)}', space=vmem, size = 0x12000, scoped, tag = 'internal scratch']
  #allocation2 [shape = 'f32[3,64,64]{2,1,0:T(8,128)}', space=vmem, size = 0x18000, scoped, tag = 'scratch operand']
  %s0 = inlined_call_operand.vmem [shape: f32[2,3,256], index: 0, kind: input, shape index: {}]
  %s1 = inlined_call_operand.hbm [shape: f32[2,3,64,64], index: 1, kind: output, shape index: {}]
  %s2 = sld [smem:[#allocation0]]
  $region45: #{tpu_custom_call.1} parent=0
    _
  %s4 = ssub.s32 1, %s2
  %s5 = scalar_select 0, %s4, %s2
  $region1: #{tpu_custom_call.1} parent=0
    #allocation3 [shape = 'u8[196608]{0}', space=vmem, size = 0x30000, scoped, tag = 'output window, operand 0']
    #allocation4 [shape = 's32[2]{0}', space=sflag, size = 0x8, scoped, tag = 'scoped memory for tpu_custom_call.1']
    %6 = vsyncpa [#allocation4], 0
    %s7 = scalar_lea.sflag [#allocation4], 1
    %8 = vsyncpa %s7, 0
    loop: start=0, step=1, limit=4
    $region2: #{tpu_custom_call.1} parent=1 // loop_pre_header
      _
    $region3: #{tpu_custom_call.1} parent=1 // loop_header
      %s10 = sphi 0, %s14
      %p11 = scmp.ge.s32.totalorder %s10, 4
      %s17 = sphi 0, %s29
      %s18 = sphi 0, %s25
      %s19 = sphi 0, %s17
      %s20 = sphi 0, %s18
      %s21 = sphi 0, %s19
      %s22 = sphi 0, %s20
      %s34 = sphi 0, %s36
      %s37 = sphi 0, %s34
      %s38 = sphi 0, %s37
      %s54 = sphi 0, %s38
      %s60 = sphi 0, %s62
      %s63 = sphi 0, %s60
      %s64 = sphi 0, %s63
      %s80 = sphi 0, %s64
    $region4: #{tpu_custom_call.1} parent=1 // loop_header_branch
      %13 = sbr.rel (%p11) target = $region8
    $region5: #{tpu_custom_call.1} parent=1 // loop_body
      %s15 = ssub.s32 %s10, 1
      %s16 = ssub.s32 %s10, 2
      %s23 = sadd.s32 1, %s18
      %p24 = scmp.ge.s32.totalorder %s23, 1
      %s25 = scalar_select %p24, 0, %s23
      %s26 = sadd.s32 1, %s17
      %s27 = scalar_select %p24, %s26, %s17
      %p28 = scmp.ge.s32.totalorder %s27, 2
      %s29 = scalar_select %p28, 0, %s27
      %s30 = ssub.s32 %s17, %s29
      %s31 = ssub.s32 %s18, %s25
      %s32 = sor.u32 %s30, %s31
      %p33 = scmp.eq.s32.totalorder %s32, 0
      %s35 = sadd.s32 %s34, 1
      %s36 = scalar_select %p33, %s34, %s35
      %p39 = pneg %p33
      %p40 = scmp.eq.s32.totalorder %s10, 1
      %p41 = por %p39, %p40
      %p42 = scmp.ne.s32.totalorder %s34, %s37
      %p43 = scmp.eq.s32.totalorder %s10, 0
      %p44 = por %p42, %p43
      %p45 = scmp.ne.s32.totalorder %s34, %s37
      %p46 = scmp.eq.s32.totalorder %s15, 1
      %p47 = por %p45, %p46
      %p48 = scmp.ne.s32.totalorder %s37, %s38
      %p49 = scmp.eq.s32.totalorder %s15, 0
      %p50 = por %p48, %p49
      %p51 = scmp.ne.s32.totalorder %s37, %s38
      %p52 = scmp.eq.s32.totalorder %s16, 1
      %p53 = por %p51, %p52
      %p55 = scmp.ne.s32.totalorder %s38, %s54
      %p56 = scmp.eq.s32.totalorder %s16, 0
      %p57 = por %p55, %p56
      %s58 = ssub.s32 %s17, %s29
      %p59 = scmp.eq.s32.totalorder %s58, 0
      %s61 = sadd.s32 %s60, 1
      %s62 = scalar_select %p59, %s60, %s61
      %p65 = pneg %p59
      %p66 = scmp.eq.s32.totalorder %s10, 1
      %p67 = por %p65, %p66
      %p68 = scmp.ne.s32.totalorder %s60, %s63
      %p69 = scmp.eq.s32.totalorder %s10, 0
      %p70 = por %p68, %p69
      %p71 = scmp.ne.s32.totalorder %s60, %s63
      %p72 = scmp.eq.s32.totalorder %s15, 1
      %p73 = por %p71, %p72
      %p74 = scmp.ne.s32.totalorder %s63, %s64
      %p75 = scmp.eq.s32.totalorder %s15, 0
      %p76 = por %p74, %p75
      %p77 = scmp.ne.s32.totalorder %s63, %s64
      %p78 = scmp.eq.s32.totalorder %s16, 1
      %p79 = por %p77, %p78
      %p81 = scmp.ne.s32.totalorder %s64, %s80
      %p82 = scmp.eq.s32.totalorder %s16, 0
      %p83 = por %p81, %p82
      %p84 = scmp.le.s32.totalorder 1, %s10
      %p85 = scmp.lt.s32.totalorder %s10, 3
      %p86 = pnand %p84, %p85
      %p87 = pneg %p86
      // Predicated region
      $region9: #{tpu_custom_call.1} parent=5 // pred_check
        _
      $region10: #{tpu_custom_call.1} parent=5 // pred_check_branch
        %89 = sbr.rel (%p86) target = $region12
      $region11: #{tpu_custom_call.1} parent=5 // pred_region
        %s90 = ssub.s32 %s10, 1
      $region12: #{tpu_custom_call.1} parent=5 // pred_fallthru
        _
      %p91 = scmp.lt.s32.totalorder %s10, 2
      // Predicated region
      $region13: #{tpu_custom_call.1} parent=5 // pred_check
        %p92 = pneg %p91
      $region14: #{tpu_custom_call.1} parent=5 // pred_check_branch
        %94 = sbr.rel (%p92) target = $region16
      $region15: #{tpu_custom_call.1} parent=5 // pred_region
        // Predicated region
        $region17: #{tpu_custom_call.1} parent=15 // pred_check
          %p95 = pneg %p44
        $region18: #{tpu_custom_call.1} parent=15 // pred_check_branch
          %97 = sbr.rel (%p95) target = $region20
        $region19: #{tpu_custom_call.1} parent=15 // pred_region
          %s98 = smul.u32 2, %s18
          %p99 = scmp.lt.s32.totalorder %s17, 1
          %s100 = scalar_select %p99, %s17, 1
          %p101 = scmp.lt.s32.totalorder %s98, 1
          %s102 = scalar_select %p101, %s98, 1
          %s103 = smul.addr %s100, 2
          %s104 = sadd.s32 %s102, %s103
          %s105 = smul.addr %s104, 4
          %s106 = scalar_lea.vmem %s0, %s105
          %s107 = smul.u32 2, %s18
        $region20: #{tpu_custom_call.1} parent=15 // pred_fallthru
          _
      $region16: #{tpu_custom_call.1} parent=5 // pred_fallthru
        _
      %p108 = scmp.le.s32.totalorder 1, %s10
      %p109 = scmp.lt.s32.totalorder %s10, 3
      %p110 = pnand %p108, %p109
      %p111 = pneg %p110
      // Predicated region
      $region21: #{tpu_custom_call.1} parent=5 // pred_check
        _
      $region22: #{tpu_custom_call.1} parent=5 // pred_check_branch
        %113 = sbr.rel (%p110) target = $region24
      $region23: #{tpu_custom_call.1} parent=5 // pred_region
        %s114 = ssub.s32 %s10, 1
        %s115 = smul.u32 2, %s20
        %p116 = scmp.lt.s32.totalorder %s19, 1
        %s117 = scalar_select %p116, %s19, 1
        %p118 = scmp.lt.s32.totalorder %s115, 1
        %s119 = scalar_select %p118, %s115, 1
        %s120 = smul.addr %s117, 2
        %s121 = sadd.s32 %s119, %s120
        %s122 = smul.addr %s121, 4
        %s123 = scalar_lea.vmem %s0, %s122
        %p124 = pneg %p50
        %p125 = pneg %p47
        %p126 = pneg %p76
        %p127 = pneg %p73
        %s128 = sand.u32 %s63, 1
        %s129 = scalar_lea.sflag [#allocation4], %s128
        %s130 = sand.u32 %s63, 1
        %s131 = smul.addr %s130, 192
        %s132 = scalar_lea.vmem [#allocation3], %s131
        %s133 = smul.u32 2, %s20
        %p134 = scmp.lt.s32.totalorder %s19, 1
        %s135 = scalar_select %p134, %s19, 1
        %p136 = scmp.lt.s32.totalorder %s133, 1
        %s137 = scalar_select %p136, %s133, 1
        %s138 = smul.addr %s135, 2
        %s139 = sadd.s32 %s137, %s138
        %s140 = smul.addr %s139, 4
        %s141 = scalar_lea.vmem %s0, %s140
        %s142 = smul.u32 2, %s20
        %p143 = scmp.eq.s32.totalorder %s20, 0
        // Predicated region
        $region25: #{tpu_custom_call.1} parent=23 // pred_check
          %p144 = pneg %p143
        $region26: #{tpu_custom_call.1} parent=23 // pred_check_branch
          %146 = sbr.rel (%p144) target = $region28
        $region27: #{tpu_custom_call.1} parent=23 // pred_region
          %vm147 = vcmask 523264
          %148 = vst.msk [vmem:[#allocation2] sm:$0xff] %vm147, 0.0
          %149 = vst.msk [vmem:[#allocation2 + $0x8] sm:$0xff] %vm147, 0.0
          %150 = vst.msk [vmem:[#allocation2 + $0x10] sm:$0xff] %vm147, 0.0
          %151 = vst.msk [vmem:[#allocation2 + $0x18] sm:$0xff] %vm147, 0.0
          %152 = vst.msk [vmem:[#allocation2 + $0x20] sm:$0xff] %vm147, 0.0
          %153 = vst.msk [vmem:[#allocation2 + $0x28] sm:$0xff] %vm147, 0.0
          %154 = vst.msk [vmem:[#allocation2 + $0x30] sm:$0xff] %vm147, 0.0
          %155 = vst.msk [vmem:[#allocation2 + $0x38] sm:$0xff] %vm147, 0.0
          %156 = vst.msk [vmem:[#allocation2 + $0x40] sm:$0xff] %vm147, 0.0
          %157 = vst.msk [vmem:[#allocation2 + $0x48] sm:$0xff] %vm147, 0.0
          %158 = vst.msk [vmem:[#allocation2 + $0x50] sm:$0xff] %vm147, 0.0
          %159 = vst.msk [vmem:[#allocation2 + $0x58] sm:$0xff] %vm147, 0.0
          %160 = vst.msk [vmem:[#allocation2 + $0x60] sm:$0xff] %vm147, 0.0
          %161 = vst.msk [vmem:[#allocation2 + $0x68] sm:$0xff] %vm147, 0.0
          %162 = vst.msk [vmem:[#allocation2 + $0x70] sm:$0xff] %vm147, 0.0
          %163 = vst.msk [vmem:[#allocation2 + $0x78] sm:$0xff] %vm147, 0.0
          %164 = vst.msk [vmem:[#allocation2 + $0x80] sm:$0xff] %vm147, 0.0
          %165 = vst.msk [vmem:[#allocation2 + $0x88] sm:$0xff] %vm147, 0.0
          %166 = vst.msk [vmem:[#allocation2 + $0x90] sm:$0xff] %vm147, 0.0
          %167 = vst.msk [vmem:[#allocation2 + $0x98] sm:$0xff] %vm147, 0.0
          %168 = vst.msk [vmem:[#allocation2 + $0xa0] sm:$0xff] %vm147, 0.0
          %169 = vst.msk [vmem:[#allocation2 + $0xa8] sm:$0xff] %vm147, 0.0
          %170 = vst.msk [vmem:[#allocation2 + $0xb0] sm:$0xff] %vm147, 0.0
          %171 = vst.msk [vmem:[#allocation2 + $0xb8] sm:$0xff] %vm147, 0.0
        $region28: #{tpu_custom_call.1} parent=23 // pred_fallthru
          _
        %v172 = vld [vmem:[%s141] sm:$0x77]
        %v173 = vadd.f32 %v172, 1e-06
        %v174 = vlog2.pop %v173
        %v175 = vmul.f32 %v174, 0.6931472
        %v177 = vrot.slane %v175, 5
        %v178 = vrot.slane %v177, 4
        %v180 = vsub.f32 %v175, %v178
        %v181 = vrot.slane %v175, 6
        %v182 = vrot.slane %v181, 4
        %v184 = vsub.f32 %v175, %v182
        %v185 = vmul.f32 %v172, %v172
        %v187 = vrot.slane %v185, 5
        %v188 = vrot.slane %v187, 4
        %v190 = vadd.f32 %v185, %v188
        %v191 = vrot.slane %v185, 6
        %v192 = vrot.slane %v191, 4
        %v194 = vadd.f32 %v190, %v192
        %v195 = vadd.f32 %v194, 1e-06
        %v196 = vrsqrt.pop %v195
        %v197 = vmul.f32 %v195, %v196
        %vm198 = vcmp.eq.f32.partialorder %v195, inf
        %v199 = vsel %vm198, %v195, %v197
        %vm200 = vcmp.eq.f32.partialorder %v195, 0.0
        %v201 = vand.u32 %v195, 2147483648
        %v202 = vsel %vm200, %v201, %v199
        %v203 = vlaneseq
        %v204 = vshrl.u32 %v203, 7
        %v205 = vadd.s32 %v204, 8
        %v206 = vadd.s32 %v204, 16
        %v207 = vadd.s32 %v204, 24
        %v208 = vadd.s32 %v204, 32
        %v209 = vadd.s32 %v204, 40
        %v210 = vadd.s32 %v204, 48
        %v211 = vadd.s32 %v204, 56
        %v212 = vcvt.s32.f32 %v204
        %v213 = vcvt.s32.f32 %v205
        %v214 = vcvt.s32.f32 %v206
        %v215 = vcvt.s32.f32 %v207
        %v216 = vcvt.s32.f32 %v208
        %v217 = vcvt.s32.f32 %v209
        %v218 = vcvt.s32.f32 %v210
        %v219 = vcvt.s32.f32 %v211
        %v220 = vmul.f32 %v212, 0.0952381
        %v221 = vmul.f32 %v213, 0.0952381
        %v222 = vmul.f32 %v214, 0.0952381
        %v223 = vmul.f32 %v215, 0.0952381
        %v224 = vmul.f32 %v216, 0.0952381
        %v225 = vmul.f32 %v217, 0.0952381
        %v226 = vmul.f32 %v218, 0.0952381
        %v227 = vmul.f32 %v219, 0.0952381
        %v228 = vsub.f32 %v220, 3.0
        %v229 = vsub.f32 %v221, 3.0
        %v230 = vsub.f32 %v222, 3.0
        %v231 = vsub.f32 %v223, 3.0
        %v232 = vsub.f32 %v224, 3.0
        %v233 = vsub.f32 %v225, 3.0
        %v234 = vsub.f32 %v226, 3.0
        %v235 = vsub.f32 %v227, 3.0
        %v237 = vlaneseq
        %v238 = vshrl.u32 %v237, 7
        %v239 = vsub.s32 0, %v238
        %v240 = vrot.slane %v180, %v239
        %v241 = vlaneseq
        %v242 = vshrl.u32 %v241, 7
        %v243 = vsub.s32 4, %v242
        %v244 = vrot.slane %v180, %v243
        %v247 = vlaneseq
        %v248 = vshrl.u32 %v247, 7
        %v249 = vsub.s32 0, %v248
        %v250 = vrot.slane %v240, %v249
        %v251 = vlaneseq
        %v252 = vshrl.u32 %v251, 7
        %v253 = vsub.s32 0, %v252
        %v254 = vrot.slane %v244, %v253
        %v255 = vsub.f32 %v228, %v250
        %v256 = vsub.f32 %v228, %v254
        %v257 = vsub.f32 %v229, %v250
        %v258 = vsub.f32 %v229, %v254
        %v259 = vsub.f32 %v230, %v250
        %v260 = vsub.f32 %v230, %v254
        %v261 = vsub.f32 %v231, %v250
        %v262 = vsub.f32 %v231, %v254
        %v263 = vsub.f32 %v232, %v250
        %v264 = vsub.f32 %v232, %v254
        %v265 = vsub.f32 %v233, %v250
        %v266 = vsub.f32 %v233, %v254
        %v267 = vsub.f32 %v234, %v250
        %v268 = vsub.f32 %v234, %v254
        %v269 = vsub.f32 %v235, %v250
        %v270 = vsub.f32 %v235, %v254
        %v271 = vmul.f32 %v255, %v255
        %v272 = vmul.f32 %v256, %v256
        %v273 = vmul.f32 %v257, %v257
        %v274 = vmul.f32 %v258, %v258
        %v275 = vmul.f32 %v259, %v259
        %v276 = vmul.f32 %v260, %v260
        %v277 = vmul.f32 %v261, %v261
        %v278 = vmul.f32 %v262, %v262
        %v279 = vmul.f32 %v263, %v263
        %v280 = vmul.f32 %v264, %v264
        %v281 = vmul.f32 %v265, %v265
        %v282 = vmul.f32 %v266, %v266
        %v283 = vmul.f32 %v267, %v267
        %v284 = vmul.f32 %v268, %v268
        %v285 = vmul.f32 %v269, %v269
        %v286 = vmul.f32 %v270, %v270
        %v287 = vmul.f32 %v271, 2500.0
        %v288 = vmul.f32 %v272, 2500.0
        %v289 = vmul.f32 %v273, 2500.0
        %v290 = vmul.f32 %v274, 2500.0
        %v291 = vmul.f32 %v275, 2500.0
        %v292 = vmul.f32 %v276, 2500.0
        %v293 = vmul.f32 %v277, 2500.0
        %v294 = vmul.f32 %v278, 2500.0
        %v295 = vmul.f32 %v279, 2500.0
        %v296 = vmul.f32 %v280, 2500.0
        %v297 = vmul.f32 %v281, 2500.0
        %v298 = vmul.f32 %v282, 2500.0
        %v299 = vmul.f32 %v283, 2500.0
        %v300 = vmul.f32 %v284, 2500.0
        %v301 = vmul.f32 %v285, 2500.0
        %v302 = vmul.f32 %v286, 2500.0
        %v303 = vadd.f32 %v287, 1.0
        %v304 = vadd.f32 %v288, 1.0
        %v305 = vadd.f32 %v289, 1.0
        %v306 = vadd.f32 %v290, 1.0
        %v307 = vadd.f32 %v291, 1.0
        %v308 = vadd.f32 %v292, 1.0
        %v309 = vadd.f32 %v293, 1.0
        %v310 = vadd.f32 %v294, 1.0
        %v311 = vadd.f32 %v295, 1.0
        %v312 = vadd.f32 %v296, 1.0
        %v313 = vadd.f32 %v297, 1.0
        %v314 = vadd.f32 %v298, 1.0
        %v315 = vadd.f32 %v299, 1.0
        %v316 = vadd.f32 %v300, 1.0
        %v317 = vadd.f32 %v301, 1.0
        %v318 = vadd.f32 %v302, 1.0
        %v319 = vrcp.pop %v303
        %v320 = vrcp.pop %v304
        %v321 = vrcp.pop %v305
        %v322 = vrcp.pop %v306
        %v323 = vrcp.pop %v307
        %v324 = vrcp.pop %v308
        %v325 = vrcp.pop %v309
        %v326 = vrcp.pop %v310
        %v327 = vrcp.pop %v311
        %v328 = vrcp.pop %v312
        %v329 = vrcp.pop %v313
        %v330 = vrcp.pop %v314
        %v331 = vrcp.pop %v315
        %v332 = vrcp.pop %v316
        %v333 = vrcp.pop %v317
        %v334 = vrcp.pop %v318
        %v336 = vlaneseq
        %v337 = vshrl.u32 %v336, 7
        %v338 = vsub.s32 0, %v337
        %v339 = vrot.slane %v184, %v338
        %v340 = vlaneseq
        %v341 = vshrl.u32 %v340, 7
        %v342 = vsub.s32 4, %v341
        %v343 = vrot.slane %v184, %v342
        %v346 = vlaneseq
        %v347 = vshrl.u32 %v346, 7
        %v348 = vsub.s32 0, %v347
        %v349 = vrot.slane %v339, %v348
        %v350 = vlaneseq
        %v351 = vshrl.u32 %v350, 7
        %v352 = vsub.s32 0, %v351
        %v353 = vrot.slane %v343, %v352
        %v354 = vsub.f32 %v228, %v349
        %v355 = vsub.f32 %v228, %v353
        %v356 = vsub.f32 %v229, %v349
        %v357 = vsub.f32 %v229, %v353
        %v358 = vsub.f32 %v230, %v349
        %v359 = vsub.f32 %v230, %v353
        %v360 = vsub.f32 %v231, %v349
        %v361 = vsub.f32 %v231, %v353
        %v362 = vsub.f32 %v232, %v349
        %v363 = vsub.f32 %v232, %v353
        %v364 = vsub.f32 %v233, %v349
        %v365 = vsub.f32 %v233, %v353
        %v366 = vsub.f32 %v234, %v349
        %v367 = vsub.f32 %v234, %v353
        %v368 = vsub.f32 %v235, %v349
        %v369 = vsub.f32 %v235, %v353
        %v370 = vmul.f32 %v354, %v354
        %v371 = vmul.f32 %v355, %v355
        %v372 = vmul.f32 %v356, %v356
        %v373 = vmul.f32 %v357, %v357
        %v374 = vmul.f32 %v358, %v358
        %v375 = vmul.f32 %v359, %v359
        %v376 = vmul.f32 %v360, %v360
        %v377 = vmul.f32 %v361, %v361
        %v378 = vmul.f32 %v362, %v362
        %v379 = vmul.f32 %v363, %v363
        %v380 = vmul.f32 %v364, %v364
        %v381 = vmul.f32 %v365, %v365
        %v382 = vmul.f32 %v366, %v366
        %v383 = vmul.f32 %v367, %v367
        %v384 = vmul.f32 %v368, %v368
        %v385 = vmul.f32 %v369, %v369
        %v386 = vmul.f32 %v370, 2500.0
        %v387 = vmul.f32 %v371, 2500.0
        %v388 = vmul.f32 %v372, 2500.0
        %v389 = vmul.f32 %v373, 2500.0
        %v390 = vmul.f32 %v374, 2500.0
        %v391 = vmul.f32 %v375, 2500.0
        %v392 = vmul.f32 %v376, 2500.0
        %v393 = vmul.f32 %v377, 2500.0
        %v394 = vmul.f32 %v378, 2500.0
        %v395 = vmul.f32 %v379, 2500.0
        %v396 = vmul.f32 %v380, 2500.0
        %v397 = vmul.f32 %v381, 2500.0
        %v398 = vmul.f32 %v382, 2500.0
        %v399 = vmul.f32 %v383, 2500.0
        %v400 = vmul.f32 %v384, 2500.0
        %v401 = vmul.f32 %v385, 2500.0
        %v402 = vadd.f32 %v386, 1.0
        %v403 = vadd.f32 %v387, 1.0
        %v404 = vadd.f32 %v388, 1.0
        %v405 = vadd.f32 %v389, 1.0
        %v406 = vadd.f32 %v390, 1.0
        %v407 = vadd.f32 %v391, 1.0
        %v408 = vadd.f32 %v392, 1.0
        %v409 = vadd.f32 %v393, 1.0
        %v410 = vadd.f32 %v394, 1.0
        %v411 = vadd.f32 %v395, 1.0
        %v412 = vadd.f32 %v396, 1.0
        %v413 = vadd.f32 %v397, 1.0
        %v414 = vadd.f32 %v398, 1.0
        %v415 = vadd.f32 %v399, 1.0
        %v416 = vadd.f32 %v400, 1.0
        %v417 = vadd.f32 %v401, 1.0
        %v418 = vrcp.pop %v402
        %v419 = vrcp.pop %v403
        %v420 = vrcp.pop %v404
        %v421 = vrcp.pop %v405
        %v422 = vrcp.pop %v406
        %v423 = vrcp.pop %v407
        %v424 = vrcp.pop %v408
        %v425 = vrcp.pop %v409
        %v426 = vrcp.pop %v410
        %v427 = vrcp.pop %v411
        %v428 = vrcp.pop %v412
        %v429 = vrcp.pop %v413
        %v430 = vrcp.pop %v414
        %v431 = vrcp.pop %v415
        %v432 = vrcp.pop %v416
        %v433 = vrcp.pop %v417
        %v434 = vlaneseq
        %v435 = vshrl.u32 %v434, 7
        %v436 = vsub.s32 1, %v435
        %v437 = vrot.slane %v180, %v436
        %v438 = vlaneseq
        %v439 = vshrl.u32 %v438, 7
        %v440 = vsub.s32 5, %v439
        %v441 = vrot.slane %v180, %v440
        %v444 = vlaneseq
        %v445 = vshrl.u32 %v444, 7
        %v446 = vsub.s32 1, %v445
        %v447 = vrot.slane %v437, %v446
        %v448 = vlaneseq
        %v449 = vshrl.u32 %v448, 7
        %v450 = vsub.s32 1, %v449
        %v451 = vrot.slane %v441, %v450
        %v452 = vsub.f32 %v228, %v447
        %v453 = vsub.f32 %v228, %v451
        %v454 = vsub.f32 %v229, %v447
        %v455 = vsub.f32 %v229, %v451
        %v456 = vsub.f32 %v230, %v447
        %v457 = vsub.f32 %v230, %v451
        %v458 = vsub.f32 %v231, %v447
        %v459 = vsub.f32 %v231, %v451
        %v460 = vsub.f32 %v232, %v447
        %v461 = vsub.f32 %v232, %v451
        %v462 = vsub.f32 %v233, %v447
        %v463 = vsub.f32 %v233, %v451
        %v464 = vsub.f32 %v234, %v447
        %v465 = vsub.f32 %v234, %v451
        %v466 = vsub.f32 %v235, %v447
        %v467 = vsub.f32 %v235, %v451
        %v468 = vmul.f32 %v452, %v452
        %v469 = vmul.f32 %v453, %v453
        %v470 = vmul.f32 %v454, %v454
        %v471 = vmul.f32 %v455, %v455
        %v472 = vmul.f32 %v456, %v456
        %v473 = vmul.f32 %v457, %v457
        %v474 = vmul.f32 %v458, %v458
        %v475 = vmul.f32 %v459, %v459
        %v476 = vmul.f32 %v460, %v460
        %v477 = vmul.f32 %v461, %v461
        %v478 = vmul.f32 %v462, %v462
        %v479 = vmul.f32 %v463, %v463
        %v480 = vmul.f32 %v464, %v464
        %v481 = vmul.f32 %v465, %v465
        %v482 = vmul.f32 %v466, %v466
        %v483 = vmul.f32 %v467, %v467
        %v484 = vmul.f32 %v468, 2500.0
        %v485 = vmul.f32 %v469, 2500.0
        %v486 = vmul.f32 %v470, 2500.0
        %v487 = vmul.f32 %v471, 2500.0
        %v488 = vmul.f32 %v472, 2500.0
        %v489 = vmul.f32 %v473, 2500.0
        %v490 = vmul.f32 %v474, 2500.0
        %v491 = vmul.f32 %v475, 2500.0
        %v492 = vmul.f32 %v476, 2500.0
        %v493 = vmul.f32 %v477, 2500.0
        %v494 = vmul.f32 %v478, 2500.0
        %v495 = vmul.f32 %v479, 2500.0
        %v496 = vmul.f32 %v480, 2500.0
        %v497 = vmul.f32 %v481, 2500.0
        %v498 = vmul.f32 %v482, 2500.0
        %v499 = vmul.f32 %v483, 2500.0
        %v500 = vadd.f32 %v484, 1.0
        %v501 = vadd.f32 %v485, 1.0
        %v502 = vadd.f32 %v486, 1.0
        %v503 = vadd.f32 %v487, 1.0
        %v504 = vadd.f32 %v488, 1.0
        %v505 = vadd.f32 %v489, 1.0
        %v506 = vadd.f32 %v490, 1.0
        %v507 = vadd.f32 %v491, 1.0
        %v508 = vadd.f32 %v492, 1.0
        %v509 = vadd.f32 %v493, 1.0
        %v510 = vadd.f32 %v494, 1.0
        %v511 = vadd.f32 %v495, 1.0
        %v512 = vadd.f32 %v496, 1.0
        %v513 = vadd.f32 %v497, 1.0
        %v514 = vadd.f32 %v498, 1.0
        %v515 = vadd.f32 %v499, 1.0
        %v516 = vrcp.pop %v500
        %v517 = vrcp.pop %v501
        %v518 = vrcp.pop %v502
        %v519 = vrcp.pop %v503
        %v520 = vrcp.pop %v504
        %v521 = vrcp.pop %v505
        %v522 = vrcp.pop %v506
        %v523 = vrcp.pop %v507
        %v524 = vrcp.pop %v508
        %v525 = vrcp.pop %v509
        %v526 = vrcp.pop %v510
        %v527 = vrcp.pop %v511
        %v528 = vrcp.pop %v512
        %v529 = vrcp.pop %v513
        %v530 = vrcp.pop %v514
        %v531 = vrcp.pop %v515
        %v533 = vlaneseq
        %v534 = vshrl.u32 %v533, 7
        %v535 = vsub.s32 0, %v534
        %v536 = vrot.slane %v202, %v535
        %v537 = vlaneseq
        %v538 = vshrl.u32 %v537, 7
        %v539 = vsub.s32 4, %v538
        %v540 = vrot.slane %v202, %v539
        %v543 = vlaneseq
        %v544 = vshrl.u32 %v543, 7
        %v545 = vsub.s32 0, %v544
        %v546 = vrot.slane %v536, %v545
        %v547 = vlaneseq
        %v548 = vshrl.u32 %v547, 7
        %v549 = vsub.s32 0, %v548
        %v550 = vrot.slane %v540, %v549
        %v551 = vmul.f32 %v319, %v546
        %v552 = vmul.f32 %v320, %v550
        %v553 = vmul.f32 %v321, %v546
        %v554 = vmul.f32 %v322, %v550
        %v555 = vmul.f32 %v323, %v546
        %v556 = vmul.f32 %v324, %v550
        %v557 = vmul.f32 %v325, %v546
        %v558 = vmul.f32 %v326, %v550
        %v559 = vmul.f32 %v327, %v546
        %v560 = vmul.f32 %v328, %v550
        %v561 = vmul.f32 %v329, %v546
        %v562 = vmul.f32 %v330, %v550
        %v563 = vmul.f32 %v331, %v546
        %v564 = vmul.f32 %v332, %v550
        %v565 = vmul.f32 %v333, %v546
        %v566 = vmul.f32 %v334, %v550
        %v567 = vmul.f32 %v418, %v546
        %v568 = vmul.f32 %v419, %v550
        %v569 = vmul.f32 %v420, %v546
        %v570 = vmul.f32 %v421, %v550
        %v571 = vmul.f32 %v422, %v546
        %v572 = vmul.f32 %v423, %v550
        %v573 = vmul.f32 %v424, %v546
        %v574 = vmul.f32 %v425, %v550
        %v575 = vmul.f32 %v426, %v546
        %v576 = vmul.f32 %v427, %v550
        %v577 = vmul.f32 %v428, %v546
        %v578 = vmul.f32 %v429, %v550
        %v579 = vmul.f32 %v430, %v546
        %v580 = vmul.f32 %v431, %v550
        %v581 = vmul.f32 %v432, %v546
        %v582 = vmul.f32 %v433, %v550
        %v583 = vld [vmem:[#allocation2] sm:$0xff]
        %v584 = vld [vmem:[#allocation2 + $0x8] sm:$0xff]
        %v585 = vld [vmem:[#allocation2 + $0x10] sm:$0xff]
        %v586 = vld [vmem:[#allocation2 + $0x18] sm:$0xff]
        %v587 = vld [vmem:[#allocation2 + $0x20] sm:$0xff]
        %v588 = vld [vmem:[#allocation2 + $0x28] sm:$0xff]
        %v589 = vld [vmem:[#allocation2 + $0x30] sm:$0xff]
        %v590 = vld [vmem:[#allocation2 + $0x38] sm:$0xff]
        %591 = vmatprep.subr.mxu0 0.0
        %592 = vmatpush1.xpose.msra.mxu0 0.0
        %593 = vmatprep.subr.mxu0 0.0
        %594 = vmatpush1.xpose.msra.mxu0 0.0
        %595 = vmatprep.subr.mxu0 0.0
        %596 = vmatpush1.xpose.msra.mxu0 0.0
        %597 = vmatprep.subr.mxu0 0.0
        %598 = vmatpush1.xpose.msra.mxu0 0.0
        %599 = vmatprep.subr.mxu0 0.0
        %600 = vmatpush1.xpose.msra.mxu0 0.0
        %601 = vmatprep.subr.mxu0 0.0
        %602 = vmatpush1.xpose.msra.mxu0 0.0
        %603 = vmatprep.subr.mxu0 0.0
        %604 = vmatpush1.xpose.msra.mxu0 0.0
        %605 = vmatprep.subr.mxu0 0.0
        %606 = vmatpush1.xpose.msra.mxu0 0.0
        %607 = vmatprep.subr.mxu0 %v433
        %608 = vmatpush1.xpose.msra.mxu0 %v432
        %609 = vmatprep.subr.mxu0 %v431
        %610 = vmatpush1.xpose.msra.mxu0 %v430
        %611 = vmatprep.subr.mxu0 %v429
        %612 = vmatpush1.xpose.msra.mxu0 %v428
        %613 = vmatprep.subr.mxu0 %v427
        %614 = vmatpush1.xpose.msra.mxu0 %v426
        %615 = vmatprep.subr.mxu0 %v425
        %616 = vmatpush1.xpose.msra.mxu0 %v424
        %617 = vmatprep.subr.mxu0 %v423
        %618 = vmatpush1.xpose.msra.mxu0 %v422
        %619 = vmatprep.subr.mxu0 %v421
        %620 = vmatpush1.xpose.msra.mxu0 %v420
        %621 = vmatprep.subr.mxu0 %v419
        %622 = vmatpush1.xpose.msra.mxu0 %v418
        %623 = vmatprep.subr.mxu0 0.0
        %624 = vmatpush2.xpose.msra.mxu0 0.0
        %625 = vmatprep.subr.mxu0 0.0
        %626 = vmatpush2.xpose.msra.mxu0 0.0
        %627 = vmatprep.subr.mxu0 0.0
        %628 = vmatpush2.xpose.msra.mxu0 0.0
        %629 = vmatprep.subr.mxu0 0.0
        %630 = vmatpush2.xpose.msra.mxu0 0.0
        %631 = vmatprep.subr.mxu0 0.0
        %632 = vmatpush2.xpose.msra.mxu0 0.0
        %633 = vmatprep.subr.mxu0 0.0
        %634 = vmatpush2.xpose.msra.mxu0 0.0
        %635 = vmatprep.subr.mxu0 0.0
        %636 = vmatpush2.xpose.msra.mxu0 0.0
        %637 = vmatprep.subr.mxu0 0.0
        %638 = vmatpush2.xpose.msra.mxu0 0.0
        %639 = vmatprep.subr.mxu0 0.0
        %640 = vmatpush2.xpose.msra.mxu0 0.0
        %641 = vmatprep.subr.mxu0 0.0
        %642 = vmatpush2.xpose.msra.mxu0 0.0
        %643 = vmatprep.subr.mxu0 0.0
        %644 = vmatpush2.xpose.msra.mxu0 0.0
        %645 = vmatprep.subr.mxu0 0.0
        %646 = vmatpush2.xpose.msra.mxu0 0.0
        %647 = vmatprep.subr.mxu0 0.0
        %648 = vmatpush2.xpose.msra.mxu0 0.0
        %649 = vmatprep.subr.mxu0 0.0
        %650 = vmatpush2.xpose.msra.mxu0 0.0
        %651 = vmatprep.subr.mxu0 0.0
        %652 = vmatpush2.xpose.msra.mxu0 0.0
        %653 = vmatprep.subr.mxu0 0.0
        %654 = vmatpush2.xpose.msra.mxu0 0.0
        %655 = vmatprep.mubr.f32.mxu0 %v552
        %656 = vmatmul.mubr.f32.gmra.mxu0 %v551
        %v657 = vpop.f32.mrf.mxu0
        %v658 = vadd.f32 0.0, %v657
        %v659 = vpop.f32.mrf.mxu0
        %660 = vmatprep.mubr.f32.mxu0 %v554
        %661 = vmatmul.mubr.f32.gmra.mxu0 %v553
        %v662 = vpop.f32.mrf.mxu0
        %v663 = vadd.f32 0.0, %v662
        %v664 = vpop.f32.mrf.mxu0
        %665 = vmatprep.mubr.f32.mxu0 %v556
        %666 = vmatmul.mubr.f32.gmra.mxu0 %v555
        %v667 = vpop.f32.mrf.mxu0
        %v668 = vadd.f32 0.0, %v667
        %v669 = vpop.f32.mrf.mxu0
        %670 = vmatprep.mubr.f32.mxu0 %v558
        %671 = vmatmul.mubr.f32.gmra.mxu0 %v557
        %v672 = vpop.f32.mrf.mxu0
        %v673 = vadd.f32 0.0, %v672
        %v674 = vpop.f32.mrf.mxu0
        %675 = vmatprep.mubr.f32.mxu0 %v560
        %676 = vmatmul.mubr.f32.gmra.mxu0 %v559
        %v677 = vpop.f32.mrf.mxu0
        %v678 = vadd.f32 0.0, %v677
        %v679 = vpop.f32.mrf.mxu0
        %680 = vmatprep.mubr.f32.mxu0 %v562
        %681 = vmatmul.mubr.f32.gmra.mxu0 %v561
        %v682 = vpop.f32.mrf.mxu0
        %v683 = vadd.f32 0.0, %v682
        %v684 = vpop.f32.mrf.mxu0
        %685 = vmatprep.mubr.f32.mxu0 %v564
        %686 = vmatmul.mubr.f32.gmra.mxu0 %v563
        %v687 = vpop.f32.mrf.mxu0
        %v688 = vadd.f32 0.0, %v687
        %v689 = vpop.f32.mrf.mxu0
        %690 = vmatprep.mubr.f32.mxu0 %v566
        %691 = vmatmul.mubr.f32.gmra.mxu0 %v565
        %v692 = vpop.f32.mrf.mxu0
        %v693 = vadd.f32 0.0, %v692
        %v694 = vpop.f32.mrf.mxu0
        %695 = vdwg.mxu0
        %v696 = vadd.f32 %v583, %v658
        %v697 = vadd.f32 %v584, %v663
        %v698 = vadd.f32 %v585, %v668
        %v699 = vadd.f32 %v586, %v673
        %v700 = vadd.f32 %v587, %v678
        %v701 = vadd.f32 %v588, %v683
        %v702 = vadd.f32 %v589, %v688
        %v703 = vadd.f32 %v590, %v693
        %vm704 = vcmask 523264
        %705 = vst.msk [vmem:[#allocation2] sm:$0xff] %vm704, %v696
        %706 = vst.msk [vmem:[#allocation2 + $0x8] sm:$0xff] %vm704, %v697
        %707 = vst.msk [vmem:[#allocation2 + $0x10] sm:$0xff] %vm704, %v698
        %708 = vst.msk [vmem:[#allocation2 + $0x18] sm:$0xff] %vm704, %v699
        %709 = vst.msk [vmem:[#allocation2 + $0x20] sm:$0xff] %vm704, %v700
        %710 = vst.msk [vmem:[#allocation2 + $0x28] sm:$0xff] %vm704, %v701
        %711 = vst.msk [vmem:[#allocation2 + $0x30] sm:$0xff] %vm704, %v702
        %712 = vst.msk [vmem:[#allocation2 + $0x38] sm:$0xff] %vm704, %v703
        %s713 = scalar_lea.vmem [#allocation2], 64
        %v714 = vld [vmem:[%s713] sm:$0xff]
        %v715 = vld [vmem:[%s713 + $0x8] sm:$0xff]
        %v716 = vld [vmem:[%s713 + $0x10] sm:$0xff]
        %v717 = vld [vmem:[%s713 + $0x18] sm:$0xff]
        %v718 = vld [vmem:[%s713 + $0x20] sm:$0xff]
        %v719 = vld [vmem:[%s713 + $0x28] sm:$0xff]
        %v720 = vld [vmem:[%s713 + $0x30] sm:$0xff]
        %v721 = vld [vmem:[%s713 + $0x38] sm:$0xff]
        %722 = vmatprep.subr.mxu0 0.0
        %723 = vmatpush1.xpose.msra.mxu0 0.0
        %724 = vmatprep.subr.mxu0 0.0
        %725 = vmatpush1.xpose.msra.mxu0 0.0
        %726 = vmatprep.subr.mxu0 0.0
        %727 = vmatpush1.xpose.msra.mxu0 0.0
        %728 = vmatprep.subr.mxu0 0.0
        %729 = vmatpush1.xpose.msra.mxu0 0.0
        %730 = vmatprep.subr.mxu0 0.0
        %731 = vmatpush1.xpose.msra.mxu0 0.0
        %732 = vmatprep.subr.mxu0 0.0
        %733 = vmatpush1.xpose.msra.mxu0 0.0
        %734 = vmatprep.subr.mxu0 0.0
        %735 = vmatpush1.xpose.msra.mxu0 0.0
        %736 = vmatprep.subr.mxu0 0.0
        %737 = vmatpush1.xpose.msra.mxu0 0.0
        %738 = vmatprep.subr.mxu0 %v531
        %739 = vmatpush1.xpose.msra.mxu0 %v530
        %740 = vmatprep.subr.mxu0 %v529
        %741 = vmatpush1.xpose.msra.mxu0 %v528
        %742 = vmatprep.subr.mxu0 %v527
        %743 = vmatpush1.xpose.msra.mxu0 %v526
        %744 = vmatprep.subr.mxu0 %v525
        %745 = vmatpush1.xpose.msra.mxu0 %v524
        %746 = vmatprep.subr.mxu0 %v523
        %747 = vmatpush1.xpose.msra.mxu0 %v522
        %748 = vmatprep.subr.mxu0 %v521
        %749 = vmatpush1.xpose.msra.mxu0 %v520
        %750 = vmatprep.subr.mxu0 %v519
        %751 = vmatpush1.xpose.msra.mxu0 %v518
        %752 = vmatprep.subr.mxu0 %v517
        %753 = vmatpush1.xpose.msra.mxu0 %v516
        %754 = vmatprep.subr.mxu0 0.0
        %755 = vmatpush2.xpose.msra.mxu0 0.0
        %756 = vmatprep.subr.mxu0 0.0
        %757 = vmatpush2.xpose.msra.mxu0 0.0
        %758 = vmatprep.subr.mxu0 0.0
        %759 = vmatpush2.xpose.msra.mxu0 0.0
        %760 = vmatprep.subr.mxu0 0.0
        %761 = vmatpush2.xpose.msra.mxu0 0.0
        %762 = vmatprep.subr.mxu0 0.0
        %763 = vmatpush2.xpose.msra.mxu0 0.0
        %764 = vmatprep.subr.mxu0 0.0
        %765 = vmatpush2.xpose.msra.mxu0 0.0
        %766 = vmatprep.subr.mxu0 0.0
        %767 = vmatpush2.xpose.msra.mxu0 0.0
        %768 = vmatprep.subr.mxu0 0.0
        %769 = vmatpush2.xpose.msra.mxu0 0.0
        %770 = vmatprep.subr.mxu0 0.0
        %771 = vmatpush2.xpose.msra.mxu0 0.0
        %772 = vmatprep.subr.mxu0 0.0
        %773 = vmatpush2.xpose.msra.mxu0 0.0
        %774 = vmatprep.subr.mxu0 0.0
        %775 = vmatpush2.xpose.msra.mxu0 0.0
        %776 = vmatprep.subr.mxu0 0.0
        %777 = vmatpush2.xpose.msra.mxu0 0.0
        %778 = vmatprep.subr.mxu0 0.0
        %779 = vmatpush2.xpose.msra.mxu0 0.0
        %780 = vmatprep.subr.mxu0 0.0
        %781 = vmatpush2.xpose.msra.mxu0 0.0
        %782 = vmatprep.subr.mxu0 0.0
        %783 = vmatpush2.xpose.msra.mxu0 0.0
        %784 = vmatprep.subr.mxu0 0.0
        %785 = vmatpush2.xpose.msra.mxu0 0.0
        %786 = vmatprep.mubr.f32.mxu0 %v552
        %787 = vmatmul.mubr.f32.gmra.mxu0 %v551
        %v788 = vpop.f32.mrf.mxu0
        %v789 = vadd.f32 0.0, %v788
        %v790 = vpop.f32.mrf.mxu0
        %791 = vmatprep.mubr.f32.mxu0 %v554
        %792 = vmatmul.mubr.f32.gmra.mxu0 %v553
        %v793 = vpop.f32.mrf.mxu0
        %v794 = vadd.f32 0.0, %v793
        %v795 = vpop.f32.mrf.mxu0
        %796 = vmatprep.mubr.f32.mxu0 %v556
        %797 = vmatmul.mubr.f32.gmra.mxu0 %v555
        %v798 = vpop.f32.mrf.mxu0
        %v799 = vadd.f32 0.0, %v798
        %v800 = vpop.f32.mrf.mxu0
        %801 = vmatprep.mubr.f32.mxu0 %v558
        %802 = vmatmul.mubr.f32.gmra.mxu0 %v557
        %v803 = vpop.f32.mrf.mxu0
        %v804 = vadd.f32 0.0, %v803
        %v805 = vpop.f32.mrf.mxu0
        %806 = vmatprep.mubr.f32.mxu0 %v560
        %807 = vmatmul.mubr.f32.gmra.mxu0 %v559
        %v808 = vpop.f32.mrf.mxu0
        %v809 = vadd.f32 0.0, %v808
        %v810 = vpop.f32.mrf.mxu0
        %811 = vmatprep.mubr.f32.mxu0 %v562
        %812 = vmatmul.mubr.f32.gmra.mxu0 %v561
        %v813 = vpop.f32.mrf.mxu0
        %v814 = vadd.f32 0.0, %v813
        %v815 = vpop.f32.mrf.mxu0
        %816 = vmatprep.mubr.f32.mxu0 %v564
        %817 = vmatmul.mubr.f32.gmra.mxu0 %v563
        %v818 = vpop.f32.mrf.mxu0
        %v819 = vadd.f32 0.0, %v818
        %v820 = vpop.f32.mrf.mxu0
        %821 = vmatprep.mubr.f32.mxu0 %v566
        %822 = vmatmul.mubr.f32.gmra.mxu0 %v565
        %v823 = vpop.f32.mrf.mxu0
        %v824 = vadd.f32 0.0, %v823
        %v825 = vpop.f32.mrf.mxu0
        %826 = vdwg.mxu0
        %v827 = vadd.f32 %v714, %v789
        %v828 = vadd.f32 %v715, %v794
        %v829 = vadd.f32 %v716, %v799
        %v830 = vadd.f32 %v717, %v804
        %v831 = vadd.f32 %v718, %v809
        %v832 = vadd.f32 %v719, %v814
        %v833 = vadd.f32 %v720, %v819
        %v834 = vadd.f32 %v721, %v824
        %835 = vst.msk [vmem:[%s713] sm:$0xff] %vm704, %v827
        %836 = vst.msk [vmem:[%s713 + $0x8] sm:$0xff] %vm704, %v828
        %837 = vst.msk [vmem:[%s713 + $0x10] sm:$0xff] %vm704, %v829
        %838 = vst.msk [vmem:[%s713 + $0x18] sm:$0xff] %vm704, %v830
        %839 = vst.msk [vmem:[%s713 + $0x20] sm:$0xff] %vm704, %v831
        %840 = vst.msk [vmem:[%s713 + $0x28] sm:$0xff] %vm704, %v832
        %841 = vst.msk [vmem:[%s713 + $0x30] sm:$0xff] %vm704, %v833
        %842 = vst.msk [vmem:[%s713 + $0x38] sm:$0xff] %vm704, %v834
        %s843 = scalar_lea.vmem [#allocation2], 128
        %v844 = vld [vmem:[%s843] sm:$0xff]
        %v845 = vld [vmem:[%s843 + $0x8] sm:$0xff]
        %v846 = vld [vmem:[%s843 + $0x10] sm:$0xff]
        %v847 = vld [vmem:[%s843 + $0x18] sm:$0xff]
        %v848 = vld [vmem:[%s843 + $0x20] sm:$0xff]
        %v849 = vld [vmem:[%s843 + $0x28] sm:$0xff]
        %v850 = vld [vmem:[%s843 + $0x30] sm:$0xff]
        %v851 = vld [vmem:[%s843 + $0x38] sm:$0xff]
        %852 = vmatprep.subr.mxu0 0.0
        %853 = vmatpush1.xpose.msra.mxu0 0.0
        %854 = vmatprep.subr.mxu0 0.0
        %855 = vmatpush1.xpose.msra.mxu0 0.0
        %856 = vmatprep.subr.mxu0 0.0
        %857 = vmatpush1.xpose.msra.mxu0 0.0
        %858 = vmatprep.subr.mxu0 0.0
        %859 = vmatpush1.xpose.msra.mxu0 0.0
        %860 = vmatprep.subr.mxu0 0.0
        %861 = vmatpush1.xpose.msra.mxu0 0.0
        %862 = vmatprep.subr.mxu0 0.0
        %863 = vmatpush1.xpose.msra.mxu0 0.0
        %864 = vmatprep.subr.mxu0 0.0
        %865 = vmatpush1.xpose.msra.mxu0 0.0
        %866 = vmatprep.subr.mxu0 0.0
        %867 = vmatpush1.xpose.msra.mxu0 0.0
        %868 = vmatprep.subr.mxu0 %v531
        %869 = vmatpush1.xpose.msra.mxu0 %v530
        %870 = vmatprep.subr.mxu0 %v529
        %871 = vmatpush1.xpose.msra.mxu0 %v528
        %872 = vmatprep.subr.mxu0 %v527
        %873 = vmatpush1.xpose.msra.mxu0 %v526
        %874 = vmatprep.subr.mxu0 %v525
        %875 = vmatpush1.xpose.msra.mxu0 %v524
        %876 = vmatprep.subr.mxu0 %v523
        %877 = vmatpush1.xpose.msra.mxu0 %v522
        %878 = vmatprep.subr.mxu0 %v521
        %879 = vmatpush1.xpose.msra.mxu0 %v520
        %880 = vmatprep.subr.mxu0 %v519
        %881 = vmatpush1.xpose.msra.mxu0 %v518
        %882 = vmatprep.subr.mxu0 %v517
        %883 = vmatpush1.xpose.msra.mxu0 %v516
        %884 = vmatprep.subr.mxu0 0.0
        %885 = vmatpush2.xpose.msra.mxu0 0.0
        %886 = vmatprep.subr.mxu0 0.0
        %887 = vmatpush2.xpose.msra.mxu0 0.0
        %888 = vmatprep.subr.mxu0 0.0
        %889 = vmatpush2.xpose.msra.mxu0 0.0
        %890 = vmatprep.subr.mxu0 0.0
        %891 = vmatpush2.xpose.msra.mxu0 0.0
        %892 = vmatprep.subr.mxu0 0.0
        %893 = vmatpush2.xpose.msra.mxu0 0.0
        %894 = vmatprep.subr.mxu0 0.0
        %895 = vmatpush2.xpose.msra.mxu0 0.0
        %896 = vmatprep.subr.mxu0 0.0
        %897 = vmatpush2.xpose.msra.mxu0 0.0
        %898 = vmatprep.subr.mxu0 0.0
        %899 = vmatpush2.xpose.msra.mxu0 0.0
        %900 = vmatprep.subr.mxu0 0.0
        %901 = vmatpush2.xpose.msra.mxu0 0.0
        %902 = vmatprep.subr.mxu0 0.0
        %903 = vmatpush2.xpose.msra.mxu0 0.0
        %904 = vmatprep.subr.mxu0 0.0
        %905 = vmatpush2.xpose.msra.mxu0 0.0
        %906 = vmatprep.subr.mxu0 0.0
        %907 = vmatpush2.xpose.msra.mxu0 0.0
        %908 = vmatprep.subr.mxu0 0.0
        %909 = vmatpush2.xpose.msra.mxu0 0.0
        %910 = vmatprep.subr.mxu0 0.0
        %911 = vmatpush2.xpose.msra.mxu0 0.0
        %912 = vmatprep.subr.mxu0 0.0
        %913 = vmatpush2.xpose.msra.mxu0 0.0
        %914 = vmatprep.subr.mxu0 0.0
        %915 = vmatpush2.xpose.msra.mxu0 0.0
        %916 = vmatprep.mubr.f32.mxu0 %v568
        %917 = vmatmul.mubr.f32.gmra.mxu0 %v567
        %v918 = vpop.f32.mrf.mxu0
        %v919 = vadd.f32 0.0, %v918
        %v920 = vpop.f32.mrf.mxu0
        %921 = vmatprep.mubr.f32.mxu0 %v570
        %922 = vmatmul.mubr.f32.gmra.mxu0 %v569
        %v923 = vpop.f32.mrf.mxu0
        %v924 = vadd.f32 0.0, %v923
        %v925 = vpop.f32.mrf.mxu0
        %926 = vmatprep.mubr.f32.mxu0 %v572
        %927 = vmatmul.mubr.f32.gmra.mxu0 %v571
        %v928 = vpop.f32.mrf.mxu0
        %v929 = vadd.f32 0.0, %v928
        %v930 = vpop.f32.mrf.mxu0
        %931 = vmatprep.mubr.f32.mxu0 %v574
        %932 = vmatmul.mubr.f32.gmra.mxu0 %v573
        %v933 = vpop.f32.mrf.mxu0
        %v934 = vadd.f32 0.0, %v933
        %v935 = vpop.f32.mrf.mxu0
        %936 = vmatprep.mubr.f32.mxu0 %v576
        %937 = vmatmul.mubr.f32.gmra.mxu0 %v575
        %v938 = vpop.f32.mrf.mxu0
        %v939 = vadd.f32 0.0, %v938
        %v940 = vpop.f32.mrf.mxu0
        %941 = vmatprep.mubr.f32.mxu0 %v578
        %942 = vmatmul.mubr.f32.gmra.mxu0 %v577
        %v943 = vpop.f32.mrf.mxu0
        %v944 = vadd.f32 0.0, %v943
        %v945 = vpop.f32.mrf.mxu0
        %946 = vmatprep.mubr.f32.mxu0 %v580
        %947 = vmatmul.mubr.f32.gmra.mxu0 %v579
        %v948 = vpop.f32.mrf.mxu0
        %v949 = vadd.f32 0.0, %v948
        %v950 = vpop.f32.mrf.mxu0
        %951 = vmatprep.mubr.f32.mxu0 %v582
        %952 = vmatmul.mubr.f32.gmra.mxu0 %v581
        %v953 = vpop.f32.mrf.mxu0
        %v954 = vadd.f32 0.0, %v953
        %v955 = vpop.f32.mrf.mxu0
        %956 = vdwg.mxu0
        %v957 = vadd.f32 %v844, %v919
        %v958 = vadd.f32 %v845, %v924
        %v959 = vadd.f32 %v846, %v929
        %v960 = vadd.f32 %v847, %v934
        %v961 = vadd.f32 %v848, %v939
        %v962 = vadd.f32 %v849, %v944
        %v963 = vadd.f32 %v850, %v949
        %v964 = vadd.f32 %v851, %v954
        %965 = vst.msk [vmem:[%s843] sm:$0xff] %vm704, %v957
        %966 = vst.msk [vmem:[%s843 + $0x8] sm:$0xff] %vm704, %v958
        %967 = vst.msk [vmem:[%s843 + $0x10] sm:$0xff] %vm704, %v959
        %968 = vst.msk [vmem:[%s843 + $0x18] sm:$0xff] %vm704, %v960
        %969 = vst.msk [vmem:[%s843 + $0x20] sm:$0xff] %vm704, %v961
        %970 = vst.msk [vmem:[%s843 + $0x28] sm:$0xff] %vm704, %v962
        %971 = vst.msk [vmem:[%s843 + $0x30] sm:$0xff] %vm704, %v963
        %972 = vst.msk [vmem:[%s843 + $0x38] sm:$0xff] %vm704, %v964
        // Predicated region
        $region29: #{tpu_custom_call.1} parent=23 // pred_check
          %p973 = pneg %p143
        $region30: #{tpu_custom_call.1} parent=23 // pred_check_branch
          %975 = sbr.rel (%p973) target = $region32
        $region31: #{tpu_custom_call.1} parent=23 // pred_region
          %v976 = vld [vmem:[#allocation2] sm:$0xff]
          %v977 = vld [vmem:[#allocation2 + $0x8] sm:$0xff]
          %v978 = vld [vmem:[#allocation2 + $0x10] sm:$0xff]
          %v979 = vld [vmem:[#allocation2 + $0x18] sm:$0xff]
          %v980 = vld [vmem:[#allocation2 + $0x20] sm:$0xff]
          %v981 = vld [vmem:[#allocation2 + $0x28] sm:$0xff]
          %v982 = vld [vmem:[#allocation2 + $0x30] sm:$0xff]
          %v983 = vld [vmem:[#allocation2 + $0x38] sm:$0xff]
          %v984 = vld [vmem:[#allocation2 + $0x40] sm:$0xff]
          %v985 = vld [vmem:[#allocation2 + $0x48] sm:$0xff]
          %v986 = vld [vmem:[#allocation2 + $0x50] sm:$0xff]
          %v987 = vld [vmem:[#allocation2 + $0x58] sm:$0xff]
          %v988 = vld [vmem:[#allocation2 + $0x60] sm:$0xff]
          %v989 = vld [vmem:[#allocation2 + $0x68] sm:$0xff]
          %v990 = vld [vmem:[#allocation2 + $0x70] sm:$0xff]
          %v991 = vld [vmem:[#allocation2 + $0x78] sm:$0xff]
          %v992 = vld [vmem:[#allocation2 + $0x80] sm:$0xff]
          %v993 = vld [vmem:[#allocation2 + $0x88] sm:$0xff]
          %v994 = vld [vmem:[#allocation2 + $0x90] sm:$0xff]
          %v995 = vld [vmem:[#allocation2 + $0x98] sm:$0xff]
          %v996 = vld [vmem:[#allocation2 + $0xa0] sm:$0xff]
          %v997 = vld [vmem:[#allocation2 + $0xa8] sm:$0xff]
          %v998 = vld [vmem:[#allocation2 + $0xb0] sm:$0xff]
          %v999 = vld [vmem:[#allocation2 + $0xb8] sm:$0xff]
          %1000 = vst.msk [vmem:[%s132] sm:$0xff] %vm704, %v976
          %1001 = vst.msk [vmem:[%s132 + $0x8] sm:$0xff] %vm704, %v977
          %1002 = vst.msk [vmem:[%s132 + $0x10] sm:$0xff] %vm704, %v978
          %1003 = vst.msk [vmem:[%s132 + $0x18] sm:$0xff] %vm704, %v979
          %1004 = vst.msk [vmem:[%s132 + $0x20] sm:$0xff] %vm704, %v980
          %1005 = vst.msk [vmem:[%s132 + $0x28] sm:$0xff] %vm704, %v981
          %1006 = vst.msk [vmem:[%s132 + $0x30] sm:$0xff] %vm704, %v982
          %1007 = vst.msk [vmem:[%s132 + $0x38] sm:$0xff] %vm704, %v983
          %1008 = vst.msk [vmem:[%s132 + $0x40] sm:$0xff] %vm704, %v984
          %1009 = vst.msk [vmem:[%s132 + $0x48] sm:$0xff] %vm704, %v985
          %1010 = vst.msk [vmem:[%s132 + $0x50] sm:$0xff] %vm704, %v986
          %1011 = vst.msk [vmem:[%s132 + $0x58] sm:$0xff] %vm704, %v987
          %1012 = vst.msk [vmem:[%s132 + $0x60] sm:$0xff] %vm704, %v988
          %1013 = vst.msk [vmem:[%s132 + $0x68] sm:$0xff] %vm704, %v989
          %1014 = vst.msk [vmem:[%s132 + $0x70] sm:$0xff] %vm704, %v990
          %1015 = vst.msk [vmem:[%s132 + $0x78] sm:$0xff] %vm704, %v991
          %1016 = vst.msk [vmem:[%s132 + $0x80] sm:$0xff] %vm704, %v992
          %1017 = vst.msk [vmem:[%s132 + $0x88] sm:$0xff] %vm704, %v993
          %1018 = vst.msk [vmem:[%s132 + $0x90] sm:$0xff] %vm704, %v994
          %1019 = vst.msk [vmem:[%s132 + $0x98] sm:$0xff] %vm704, %v995
          %1020 = vst.msk [vmem:[%s132 + $0xa0] sm:$0xff] %vm704, %v996
          %1021 = vst.msk [vmem:[%s132 + $0xa8] sm:$0xff] %vm704, %v997
          %1022 = vst.msk [vmem:[%s132 + $0xb0] sm:$0xff] %vm704, %v998
          %1023 = vst.msk [vmem:[%s132 + $0xb8] sm:$0xff] %vm704, %v999
        $region32: #{tpu_custom_call.1} parent=23 // pred_fallthru
          _
        %s1024 = sand.u32 %s63, 1
        %s1025 = scalar_lea.sflag [#allocation4], %s1024
        %s1026 = sand.u32 %s63, 1
        %s1027 = smul.addr %s1026, 192
        %s1028 = scalar_lea.vmem [#allocation3], %s1027
        // Predicated region
        $region33: #{tpu_custom_call.1} parent=23 // pred_check
          %p1029 = pneg %p73
        $region34: #{tpu_custom_call.1} parent=23 // pred_check_branch
          %1031 = sbr.rel (%p1029) target = $region36
        $region35: #{tpu_custom_call.1} parent=23 // pred_region
          %s1033 = ssub.s32 3072, 3072
          %1034 = vsyncadd %s1025, %s1033
          %s1035 = smul.addr %s19, 24
          %s1036 = smul.addr %s1035, 128
          %s1037 = scalar_lea.hbm %s1, %s1036
          %s1038 = sshll.u32 %s1028, 4
          %s1039 = int_to_ptr.vmem [resolvable:$true] %s1038
          %1044 = dma.vmem_to_hbm [thread:$0]  %s1039, 3072, %s1037, %s1025, 128, 128, 8
        $region36: #{tpu_custom_call.1} parent=23 // pred_fallthru
          _
      $region24: #{tpu_custom_call.1} parent=5 // pred_fallthru
        _
      %p1045 = scmp.le.s32.totalorder 2, %s10
      // Predicated region
      $region37: #{tpu_custom_call.1} parent=5 // pred_check
        %p1046 = pneg %p1045
      $region38: #{tpu_custom_call.1} parent=5 // pred_check_branch
        %1048 = sbr.rel (%p1046) target = $region40
      $region39: #{tpu_custom_call.1} parent=5 // pred_region
        %s1049 = ssub.s32 %s10, 2
        // Predicated region
        $region41: #{tpu_custom_call.1} parent=39 // pred_check
          %p1050 = pneg %p79
        $region42: #{tpu_custom_call.1} parent=39 // pred_check_branch
          %1052 = sbr.rel (%p1050) target = $region44
        $region43: #{tpu_custom_call.1} parent=39 // pred_region
          %s1053 = sand.u32 %s64, 1
          %s1054 = scalar_lea.sflag [#allocation4], %s1053
          %s1055 = sand.u32 %s64, 1
          %s1056 = smul.addr %s1055, 192
          %s1057 = scalar_lea.vmem [#allocation3], %s1056
          %1058 = dma.done %s1054, 3072
        $region44: #{tpu_custom_call.1} parent=39 // pred_fallthru
          _
      $region40: #{tpu_custom_call.1} parent=5 // pred_fallthru
        _
    $region6: #{tpu_custom_call.1} parent=1 // loop_footer
      %s14 = sadd.s32 1, %s10
    $region7: #{tpu_custom_call.1} parent=1 // loop_footer_branch
      %9 = sbr.rel target = $region3
    $region8: #{tpu_custom_call.1} parent=1 // loop_exit
      _
    %1059 = vsyncpa [#allocation4], 1
    %s1060 = scalar_lea.sflag [#allocation4], 1
    %1061 = vsyncpa %s1060, 1

</llo_original>
